<compile_context>
chip_gen: v6e
topology: v6e:2x2x1
jax: 0.10.0
libtpu: 0.0.40
codegen_flags: <defaults>
</compile_context>

<pallas_src>
import functools
import math

import jax
import jax.numpy as jnp
from jax import lax
from jax.experimental import pallas as pl
from jax.experimental.pallas import tpu as pltpu

LN_EPS = 1e-5
NEG_INF = -1e30  # large-negative additive mask (avoids NaN for padded keys)


def _round_up(x, m):
    return (x + m - 1) // m * m


def _layer_norm(y):
    # LayerNorm over the last axis, elementwise_affine=False.
    mean = jnp.mean(y, axis=-1, keepdims=True)
    var = jnp.mean(jnp.square(y - mean), axis=-1, keepdims=True)
    return (y - mean) * lax.rsqrt(var + LN_EPS)


# --------------------------------------------------------------------------
# Kernel 1: per-(batch, head) self-attention -> context (S, Dh)
# --------------------------------------------------------------------------
def _attn_head_kernel(x_ref, wq_ref, bq_ref, wk_ref, bk_ref, wv_ref, bv_ref,
                      mask_ref, ctx_ref, *, scale):
    # x_ref : (1, S, E)   wq/wk/wv : (1, Dh, E)   bq/bk/bv : (1, 1, Dh)
    # mask  : (1, 1, S)   ctx_ref  : (1, 1, S, Dh)
    x = x_ref[0]                       # (S, E)
    dn = (((1,), (1,)), ((), ()))      # contract last dim with last dim (x @ W.T)

    q = lax.dot_general(x, wq_ref[0], dn, preferred_element_type=jnp.float32) + bq_ref[0]
    k = lax.dot_general(x, wk_ref[0], dn, preferred_element_type=jnp.float32) + bk_ref[0]
    v = lax.dot_general(x, wv_ref[0], dn, preferred_element_type=jnp.float32) + bv_ref[0]

    # (S, S) attention logits, additive key-padding mask broadcast over queries.
    scores = lax.dot_general(q, k, dn, preferred_element_type=jnp.float32) * scale
    scores = scores + mask_ref[0]      # (1, S) broadcasts over query rows

    m = jnp.max(scores, axis=-1, keepdims=True)
    p = jnp.exp(scores - m)
    p = p / jnp.sum(p, axis=-1, keepdims=True)

    ctx_ref[0, 0] = jnp.dot(p, v, preferred_element_type=jnp.float32)  # (S, Dh)


# --------------------------------------------------------------------------
# Kernel 2: out-projection + residual + LayerNorm (row-tiled)
# --------------------------------------------------------------------------
def _proj_residual_ln_kernel(ctx_ref, x_ref, wo_ref, bo_ref, o_ref):
    # ctx_ref/x_ref/o_ref : (TM, E)   wo_ref : (E, E)   bo_ref : (1, E)
    dn = (((1,), (1,)), ((), ()))
    y = (lax.dot_general(ctx_ref[...], wo_ref[...], dn,
                         preferred_element_type=jnp.float32)
         + bo_ref[...] + x_ref[...])
    o_ref[...] = _layer_norm(y)


# --------------------------------------------------------------------------
# Kernel 3: FFN (relu) + residual + LayerNorm (row-tiled)
# --------------------------------------------------------------------------
def _ffn_residual_ln_kernel(x_ref, w1_ref, b1_ref, w2_ref, b2_ref, o_ref):
    # x_ref/o_ref : (TM, E)   w1 : (F, E)  b1 : (1, F)   w2 : (E, F)  b2 : (1, E)
    dn = (((1,), (1,)), ((), ()))
    x = x_ref[...]
    h = lax.dot_general(x, w1_ref[...], dn,
                        preferred_element_type=jnp.float32) + b1_ref[...]
    h = jnp.maximum(h, 0.0)                                   # relu
    y = lax.dot_general(h, w2_ref[...], dn,
                        preferred_element_type=jnp.float32) + b2_ref[...] + x
    o_ref[...] = _layer_norm(y)


# --------------------------------------------------------------------------
# Wrapper: full encoder-layer forward
# --------------------------------------------------------------------------
def my_transformer_encoder_layer(x, params, key_padding_mask, *, num_heads,
                                 src_mask=None, row_tile=512):
    """x: (B, S, E) float32, key_padding_mask: (B, S) bool (True = pad)."""
    del src_mask  # accepted for signature parity; unused by the PyTorch forward
    f32 = jnp.float32
    B, S, E = x.shape
    H = num_heads
    Dh = E // H
    F = params["w1"].shape[0]
    x = x.astype(f32)

    # ---- split packed in_proj into per-head (H, Dh, E) weights / (H, 1, Dh) biases
    wqkv = params["in_proj_w"].astype(f32)
    bqkv = params["in_proj_b"].astype(f32)
    wq = wqkv[:E].reshape(H, Dh, E)
    wk = wqkv[E:2 * E].reshape(H, Dh, E)
    wv = wqkv[2 * E:].reshape(H, Dh, E)
    bq = bqkv[:E].reshape(H, 1, Dh)
    bk = bqkv[E:2 * E].reshape(H, 1, Dh)
    bv = bqkv[2 * E:].reshape(H, 1, Dh)

    # additive key-padding mask (B, 1, S)
    addmask = jnp.where(key_padding_mask, NEG_INF, 0.0).astype(f32).reshape(B, 1, S)

    # ---- stage 1: attention heads, grid over (batch, head) -> (B, H, S, Dh)
    ctx = pl.pallas_call(
        functools.partial(_attn_head_kernel, scale=1.0 / math.sqrt(Dh)),
        out_shape=jax.ShapeDtypeStruct((B, H, S, Dh), f32),
        grid=(B, H),
        in_specs=[
            pl.BlockSpec((1, S, E), lambda b, h: (b, 0, 0)),
            pl.BlockSpec((1, Dh, E), lambda b, h: (h, 0, 0)),
            pl.BlockSpec((1, 1, Dh), lambda b, h: (h, 0, 0)),
            pl.BlockSpec((1, Dh, E), lambda b, h: (h, 0, 0)),
            pl.BlockSpec((1, 1, Dh), lambda b, h: (h, 0, 0)),
            pl.BlockSpec((1, Dh, E), lambda b, h: (h, 0, 0)),
            pl.BlockSpec((1, 1, Dh), lambda b, h: (h, 0, 0)),
            pl.BlockSpec((1, 1, S), lambda b, h: (b, 0, 0)),
        ],
        out_specs=pl.BlockSpec((1, 1, S, Dh), lambda b, h: (b, h, 0, 0)),
        compiler_params=pltpu.CompilerParams(
            dimension_semantics=("parallel", "parallel")),
    )(x, wq, bq, wk, bk, wv, bv, addmask)

    # merge heads back to lane-dense (B, S, E) in the wrapper (pure layout op)
    ctx_merged = ctx.transpose(0, 2, 1, 3).reshape(B, S, E)

    # ---- row tiling for the two row-parallel stages
    N = B * S
    TM = min(row_tile, _round_up(N, 8))
    N_pad = _round_up(N, TM)

    def pad_rows(a):
        return a if N_pad == N else jnp.pad(a, ((0, N_pad - N), (0, 0)))

    ctx_flat = pad_rows(ctx_merged.reshape(N, E))
    x_flat = pad_rows(x.reshape(N, E))
    grid = (N_pad // TM,)
    row_params = pltpu.CompilerParams(dimension_semantics=("parallel",))

    # ---- stage 2: out-projection + residual + LayerNorm
    wo = params["out_proj_w"].astype(f32)
    bo = params["out_proj_b"].astype(f32).reshape(1, E)
    y = pl.pallas_call(
        _proj_residual_ln_kernel,
        out_shape=jax.ShapeDtypeStruct((N_pad, E), f32),
        grid=grid,
        in_specs=[
            pl.BlockSpec((TM, E), lambda i: (i, 0)),
            pl.BlockSpec((TM, E), lambda i: (i, 0)),
            pl.BlockSpec((E, E), lambda i: (0, 0)),
            pl.BlockSpec((1, E), lambda i: (0, 0)),
        ],
        out_specs=pl.BlockSpec((TM, E), lambda i: (i, 0)),
        compiler_params=row_params,
    )(ctx_flat, x_flat, wo, bo)

    # ---- stage 3: FFN + residual + LayerNorm
    w1 = params["w1"].astype(f32)
    b1 = params["b1"].astype(f32).reshape(1, F)
    w2 = params["w2"].astype(f32)
    b2 = params["b2"].astype(f32).reshape(1, E)
    out = pl.pallas_call(
        _ffn_residual_ln_kernel,
        out_shape=jax.ShapeDtypeStruct((N_pad, E), f32),
        grid=grid,
        in_specs=[
            pl.BlockSpec((TM, E), lambda i: (i, 0)),
            pl.BlockSpec((F, E), lambda i: (0, 0)),
            pl.BlockSpec((1, F), lambda i: (0, 0)),
            pl.BlockSpec((E, F), lambda i: (0, 0)),
            pl.BlockSpec((1, E), lambda i: (0, 0)),
        ],
        out_specs=pl.BlockSpec((TM, E), lambda i: (i, 0)),
        compiler_params=row_params,
    )(y, w1, b1, w2, b2)

    return out[:N].reshape(B, S, E)


# --------------------------------------------------------------------------
# Pure-JAX reference (mirrors the PyTorch module with dropout=0)
# --------------------------------------------------------------------------
def _reference(x, params, key_padding_mask, *, num_heads):
    B, S, E = x.shape
    H = num_heads
    Dh = E // H
    wqkv, bqkv = params["in_proj_w"], params["in_proj_b"]
    Wq, Wk, Wv = wqkv[:E], wqkv[E:2 * E], wqkv[2 * E:]
    bq, bk, bv = bqkv[:E], bqkv[E:2 * E], bqkv[2 * E:]

    def split_heads(t):
        return t.reshape(B, S, H, Dh).transpose(0, 2, 1, 3)

    q = split_heads(x @ Wq.T + bq)
    k = split_heads(x @ Wk.T + bk)
    v = split_heads(x @ Wv.T + bv)
    scores = jnp.einsum("bhqd,bhkd->bhqk", q, k) / math.sqrt(Dh)
    scores = scores + jnp.where(key_padding_mask, NEG_INF, 0.0)[:, None, None, :]
    p = jax.nn.softmax(scores, axis=-1)
    ctx = jnp.einsum("bhqk,bhkd->bhqd", p, v).transpose(0, 2, 1, 3).reshape(B, S, E)
    attn = ctx @ params["out_proj_w"].T + params["out_proj_b"]

    def ln(t):
        mu = jnp.mean(t, axis=-1, keepdims=True)
        var = jnp.mean(jnp.square(t - mu), axis=-1, keepdims=True)
        return (t - mu) * lax.rsqrt(var + LN_EPS)

    y = ln(x + attn)
    ff = jnp.maximum(y @ params["w1"].T + params["b1"], 0.0) @ params["w2"].T + params["b2"]
    return ln(y + ff)


if __name__ == "__main__":
    key = jax.random.PRNGKey(0)
    ks = jax.random.split(key, 9)

    E, H, F = 32, 4, 64          # input_size, num_heads, dim_feedforward
    B, S = 2, 8                  # batch, seq (batch_first=True)
    init = 0.1

    x = jax.random.normal(ks[0], (B, S, E), dtype=jnp.float32)
    params = dict(
        in_proj_w=init * jax.random.normal(ks[1], (3 * E, E), dtype=jnp.float32),
        in_proj_b=init * jax.random.normal(ks[2], (3 * E,), dtype=jnp.float32),
        out_proj_w=init * jax.random.normal(ks[3], (E, E), dtype=jnp.float32),
        out_proj_b=init * jax.random.normal(ks[4], (E,), dtype=jnp.float32),
        w1=init * jax.random.normal(ks[5], (F, E), dtype=jnp.float32),
        b1=init * jax.random.normal(ks[6], (F,), dtype=jnp.float32),
        w2=init * jax.random.normal(ks[7], (E, F), dtype=jnp.float32),
        b2=init * jax.random.normal(ks[8], (E,), dtype=jnp.float32),
    )

    # key_padding_mask: True = ignore that key position (batch 1 pads last 2).
    lengths = jnp.array([S, S - 2])
    key_padding_mask = jnp.arange(S)[None, :] >= lengths[:, None]     # (B, S) bool

    out = my_transformer_encoder_layer(x, params, key_padding_mask,
                                       num_heads=H, src_mask=None)
    out = jax.block_until_ready(out)

    ref = _reference(x, params, key_padding_mask, num_heads=H)
    assert out.shape == (B, S, E)
    err = float(jnp.max(jnp.abs(out - ref)))
    assert jnp.allclose(out, ref, atol=3e-5, rtol=3e-5), f"max abs err {err}"

    print("KERNEL_OK")
</pallas_src>

<mosaic_0001>
module attributes {stable_mosaic.version = 11 : i64} {
  func.func @_attn_head_kernel(%arg0: i32, %arg1: i32, %arg2: memref<1x8x32xf32, #tpu.memory_space<vmem>>, %arg3: memref<1x8x32xf32, #tpu.memory_space<vmem>>, %arg4: memref<1x1x8xf32, #tpu.memory_space<vmem>>, %arg5: memref<1x8x32xf32, #tpu.memory_space<vmem>>, %arg6: memref<1x1x8xf32, #tpu.memory_space<vmem>>, %arg7: memref<1x8x32xf32, #tpu.memory_space<vmem>>, %arg8: memref<1x1x8xf32, #tpu.memory_space<vmem>>, %arg9: memref<1x1x8xf32, #tpu.memory_space<vmem>>, %arg10: memref<1x1x8x8xf32, #tpu.memory_space<vmem>>) attributes {dimension_semantics = [#tpu.dimension_semantics<parallel>, #tpu.dimension_semantics<parallel>], iteration_bounds = array<i64: 2, 4>, scalar_prefetch = 0 : i64, scratch_operands = 0 : i64, tpu.core_type = #tpu.core_type<tc>, window_params = [{transform_indices = @transform_0, window_bounds = array<i64: 1, 8, 32>}, {transform_indices = @transform_1, window_bounds = array<i64: 1, 8, 32>}, {transform_indices = @transform_2, window_bounds = array<i64: 1, 1, 8>}, {transform_indices = @transform_3, window_bounds = array<i64: 1, 8, 32>}, {transform_indices = @transform_4, window_bounds = array<i64: 1, 1, 8>}, {transform_indices = @transform_5, window_bounds = array<i64: 1, 8, 32>}, {transform_indices = @transform_6, window_bounds = array<i64: 1, 1, 8>}, {transform_indices = @transform_7, window_bounds = array<i64: 1, 1, 8>}, {transform_indices = @transform_8, window_bounds = array<i64: 1, 1, 8, 8>}]} {
    %c0 = arith.constant 0 : index
    %c0_0 = arith.constant 0 : index
    %c0_1 = arith.constant 0 : index
    %0 = vector.load %arg2[%c0, %c0_0, %c0_1] : memref<1x8x32xf32, #tpu.memory_space<vmem>>, vector<1x8x32xf32>
    %1 = vector.shape_cast %0 : vector<1x8x32xf32> to vector<8x32xf32>
    %c0_2 = arith.constant 0 : index
    %c0_3 = arith.constant 0 : index
    %c0_4 = arith.constant 0 : index
    %2 = vector.load %arg3[%c0_2, %c0_3, %c0_4] : memref<1x8x32xf32, #tpu.memory_space<vmem>>, vector<1x8x32xf32>
    %3 = vector.shape_cast %2 : vector<1x8x32xf32> to vector<8x32xf32>
    %cst = arith.constant dense<0.000000e+00> : vector<8x8xf32>
    %4 = tpu.matmul %1, %3, %cst {dimension_numbers = #tpu.dot_dimension_numbers<[1], [1], [0], [0], [0, 0, 1, 0], [], []>} : vector<8x32xf32>, vector<8x32xf32>, vector<8x8xf32> -> vector<8x8xf32>
    %c0_5 = arith.constant 0 : index
    %c0_6 = arith.constant 0 : index
    %c0_7 = arith.constant 0 : index
    %5 = vector.load %arg4[%c0_5, %c0_6, %c0_7] : memref<1x1x8xf32, #tpu.memory_space<vmem>>, vector<1x1x8xf32>
    %6 = vector.shape_cast %5 : vector<1x1x8xf32> to vector<1x8xf32>
    %7 = vector.broadcast %6 : vector<1x8xf32> to vector<8x8xf32>
    %8 = arith.addf %4, %7 : vector<8x8xf32>
    %c0_8 = arith.constant 0 : index
    %c0_9 = arith.constant 0 : index
    %c0_10 = arith.constant 0 : index
    %9 = vector.load %arg5[%c0_8, %c0_9, %c0_10] : memref<1x8x32xf32, #tpu.memory_space<vmem>>, vector<1x8x32xf32>
    %10 = vector.shape_cast %9 : vector<1x8x32xf32> to vector<8x32xf32>
    %cst_11 = arith.constant dense<0.000000e+00> : vector<8x8xf32>
    %11 = tpu.matmul %1, %10, %cst_11 {dimension_numbers = #tpu.dot_dimension_numbers<[1], [1], [0], [0], [0, 0, 1, 0], [], []>} : vector<8x32xf32>, vector<8x32xf32>, vector<8x8xf32> -> vector<8x8xf32>
    %c0_12 = arith.constant 0 : index
    %c0_13 = arith.constant 0 : index
    %c0_14 = arith.constant 0 : index
    %12 = vector.load %arg6[%c0_12, %c0_13, %c0_14] : memref<1x1x8xf32, #tpu.memory_space<vmem>>, vector<1x1x8xf32>
    %13 = vector.shape_cast %12 : vector<1x1x8xf32> to vector<1x8xf32>
    %14 = vector.broadcast %13 : vector<1x8xf32> to vector<8x8xf32>
    %15 = arith.addf %11, %14 : vector<8x8xf32>
    %c0_15 = arith.constant 0 : index
    %c0_16 = arith.constant 0 : index
    %c0_17 = arith.constant 0 : index
    %16 = vector.load %arg7[%c0_15, %c0_16, %c0_17] : memref<1x8x32xf32, #tpu.memory_space<vmem>>, vector<1x8x32xf32>
    %17 = vector.shape_cast %16 : vector<1x8x32xf32> to vector<8x32xf32>
    %cst_18 = arith.constant dense<0.000000e+00> : vector<8x8xf32>
    %18 = tpu.matmul %1, %17, %cst_18 {dimension_numbers = #tpu.dot_dimension_numbers<[1], [1], [0], [0], [0, 0, 1, 0], [], []>} : vector<8x32xf32>, vector<8x32xf32>, vector<8x8xf32> -> vector<8x8xf32>
    %c0_19 = arith.constant 0 : index
    %c0_20 = arith.constant 0 : index
    %c0_21 = arith.constant 0 : index
    %19 = vector.load %arg8[%c0_19, %c0_20, %c0_21] : memref<1x1x8xf32, #tpu.memory_space<vmem>>, vector<1x1x8xf32>
    %20 = vector.shape_cast %19 : vector<1x1x8xf32> to vector<1x8xf32>
    %21 = vector.broadcast %20 : vector<1x8xf32> to vector<8x8xf32>
    %22 = arith.addf %18, %21 : vector<8x8xf32>
    %cst_22 = arith.constant dense<0.000000e+00> : vector<8x8xf32>
    %23 = tpu.matmul %8, %15, %cst_22 {dimension_numbers = #tpu.dot_dimension_numbers<[1], [1], [0], [0], [0, 0, 1, 0], [], []>} : vector<8x8xf32>, vector<8x8xf32>, vector<8x8xf32> -> vector<8x8xf32>
    %cst_23 = arith.constant 0.353553385 : f32
    %24 = vector.broadcast %cst_23 : f32 to vector<8x8xf32>
    %25 = arith.mulf %23, %24 : vector<8x8xf32>
    %c0_24 = arith.constant 0 : index
    %c0_25 = arith.constant 0 : index
    %c0_26 = arith.constant 0 : index
    %26 = vector.load %arg9[%c0_24, %c0_25, %c0_26] : memref<1x1x8xf32, #tpu.memory_space<vmem>>, vector<1x1x8xf32>
    %27 = vector.shape_cast %26 : vector<1x1x8xf32> to vector<1x8xf32>
    %28 = vector.broadcast %27 : vector<1x8xf32> to vector<8x8xf32>
    %29 = arith.addf %25, %28 : vector<8x8xf32>
    %cst_27 = arith.constant dense<0xFF800000> : vector<8xf32>
    %30 = vector.multi_reduction <maximumf>, %29, %cst_27 [1] : vector<8x8xf32> to vector<8xf32>
    %31 = vector.shape_cast %30 : vector<8xf32> to vector<8x1xf32>
    %32 = vector.broadcast %31 : vector<8x1xf32> to vector<8x8xf32>
    %33 = arith.subf %29, %32 : vector<8x8xf32>
    %34 = math.exp %33 : vector<8x8xf32>
    %cst_28 = arith.constant dense<0.000000e+00> : vector<8xf32>
    %35 = vector.multi_reduction <add>, %34, %cst_28 [1] : vector<8x8xf32> to vector<8xf32>
    %36 = vector.shape_cast %35 : vector<8xf32> to vector<8x1xf32>
    %37 = vector.broadcast %36 : vector<8x1xf32> to vector<8x8xf32>
    %38 = arith.divf %34, %37 : vector<8x8xf32>
    %cst_29 = arith.constant dense<0.000000e+00> : vector<8x8xf32>
    %39 = tpu.matmul %38, %22, %cst_29 {dimension_numbers = #tpu.dot_dimension_numbers<[1], [0], [0], [1], [0, 0, 1, 1], [], []>} : vector<8x8xf32>, vector<8x8xf32>, vector<8x8xf32> -> vector<8x8xf32>
    %c0_30 = arith.constant 0 : index
    %c0_31 = arith.constant 0 : index
    %c0_32 = arith.constant 0 : index
    %c0_33 = arith.constant 0 : index
    %40 = vector.load %arg10[%c0_30, %c0_31, %c0_32, %c0_33] : memref<1x1x8x8xf32, #tpu.memory_space<vmem>>, vector<1x1x8x8xf32>
    %41 = vector.shape_cast %40 : vector<1x1x8x8xf32> to vector<8x8xf32>
    %42 = vector.shape_cast %39 : vector<8x8xf32> to vector<1x1x8x8xf32>
    tpu.vector_store %arg10[%c0_30, %c0_31, %c0_32, %c0_33], %42 {strides = array<i32>} : memref<1x1x8x8xf32, #tpu.memory_space<vmem>>, vector<1x1x8x8xf32>,
    return
  }
  func.func @transform_0(%arg0: i32, %arg1: i32) -> (i32, i32, i32) {
    %c0_i32 = arith.constant 0 : i32
    %c0_i32_0 = arith.constant 0 : i32
    %c0_i32_1 = arith.constant 0 : i32
    return %arg0, %c0_i32, %c0_i32_0 : i32, i32, i32
  }
  func.func @transform_1(%arg0: i32, %arg1: i32) -> (i32, i32, i32) {
    %c0_i32 = arith.constant 0 : i32
    %c0_i32_0 = arith.constant 0 : i32
    %c0_i32_1 = arith.constant 0 : i32
    return %arg1, %c0_i32, %c0_i32_0 : i32, i32, i32
  }
  func.func @transform_2(%arg0: i32, %arg1: i32) -> (i32, i32, i32) {
    %c0_i32 = arith.constant 0 : i32
    %c0_i32_0 = arith.constant 0 : i32
    %c0_i32_1 = arith.constant 0 : i32
    return %arg1, %c0_i32, %c0_i32_0 : i32, i32, i32
  }
  func.func @transform_3(%arg0: i32, %arg1: i32) -> (i32, i32, i32) {
    %c0_i32 = arith.constant 0 : i32
    %c0_i32_0 = arith.constant 0 : i32
    %c0_i32_1 = arith.constant 0 : i32
    return %arg1, %c0_i32, %c0_i32_0 : i32, i32, i32
  }
  func.func @transform_4(%arg0: i32, %arg1: i32) -> (i32, i32, i32) {
    %c0_i32 = arith.constant 0 : i32
    %c0_i32_0 = arith.constant 0 : i32
    %c0_i32_1 = arith.constant 0 : i32
    return %arg1, %c0_i32, %c0_i32_0 : i32, i32, i32
  }
  func.func @transform_5(%arg0: i32, %arg1: i32) -> (i32, i32, i32) {
    %c0_i32 = arith.constant 0 : i32
    %c0_i32_0 = arith.constant 0 : i32
    %c0_i32_1 = arith.constant 0 : i32
    return %arg1, %c0_i32, %c0_i32_0 : i32, i32, i32
  }
  func.func @transform_6(%arg0: i32, %arg1: i32) -> (i32, i32, i32) {
    %c0_i32 = arith.constant 0 : i32
    %c0_i32_0 = arith.constant 0 : i32
    %c0_i32_1 = arith.constant 0 : i32
    return %arg1, %c0_i32, %c0_i32_0 : i32, i32, i32
  }
  func.func @transform_7(%arg0: i32, %arg1: i32) -> (i32, i32, i32) {
    %c0_i32 = arith.constant 0 : i32
    %c0_i32_0 = arith.constant 0 : i32
    %c0_i32_1 = arith.constant 0 : i32
    return %arg0, %c0_i32, %c0_i32_0 : i32, i32, i32
  }
  func.func @transform_8(%arg0: i32, %arg1: i32) -> (i32, i32, i32, i32) {
    %c0_i32 = arith.constant 0 : i32
    %c0_i32_0 = arith.constant 0 : i32
    %c0_i32_1 = arith.constant 0 : i32
    return %arg0, %arg1, %c0_i32, %c0_i32_0 : i32, i32, i32, i32
  }
}

</mosaic_0001>

<llo_original>
// kernel: tpu_custom_call.1
$region0: #{tpu_custom_call.1}
  #allocation0 [shape = 'u32[]', space=smem, size = 0x4, offset = 0x4, fixed_abs, tag = 'smem constant byte address 0x4 - core index']
  #allocation1 [shape = 'u32[144,128]{1,0:T(1,128)}', space=vmem, size = 0x12000, scoped, tag = 'internal scratch']
  %s0 = inlined_call_operand.hbm [shape: f32[2,8,32], index: 0, kind: input, shape index: {}]
  %s1 = inlined_call_operand.hbm [shape: f32[4,8,32], index: 1, kind: input, shape index: {}]
  %s2 = inlined_call_operand.hbm [shape: f32[4,1,8], index: 2, kind: input, shape index: {}]
  %s3 = inlined_call_operand.hbm [shape: f32[4,8,32], index: 3, kind: input, shape index: {}]
  %s4 = inlined_call_operand.vmem [shape: f32[4,1,8], index: 4, kind: input, shape index: {}]
  %s5 = inlined_call_operand.hbm [shape: f32[4,8,32], index: 5, kind: input, shape index: {}]
  %s6 = inlined_call_operand.vmem [shape: f32[4,1,8], index: 6, kind: input, shape index: {}]
  %s7 = inlined_call_operand.vmem [shape: f32[2,1,8], index: 7, kind: input, shape index: {}]
  %s8 = inlined_call_operand.hbm [shape: f32[2,4,8,8], index: 8, kind: output, shape index: {}]
  %s9 = sld [smem:[#allocation0]]
  $region85: #{tpu_custom_call.1} parent=0
    _
  %s11 = ssub.s32 1, %s9
  %s12 = scalar_select 0, %s11, %s9
  $region1: #{tpu_custom_call.1} parent=0
    #allocation2 [shape = 'u8[8192]{0}', space=vmem, size = 0x2000, scoped, tag = 'input window, operand 0']
    #allocation3 [shape = 's32[2]{0}', space=sflag, size = 0x8, scoped, tag = 'scoped memory for tpu_custom_call.1']
    #allocation4 [shape = 's32[2]{0}', space=sflag, size = 0x8, scoped, tag = 'scoped memory for tpu_custom_call.1']
    #allocation5 [shape = 'u8[8192]{0}', space=vmem, size = 0x2000, scoped, tag = 'input window, operand 1']
    #allocation6 [shape = 's32[2]{0}', space=sflag, size = 0x8, scoped, tag = 'scoped memory for tpu_custom_call.1']
    #allocation7 [shape = 'u8[1024]{0}', space=vmem, size = 0x400, scoped, tag = 'input window, operand 2']
    #allocation8 [shape = 'u8[8192]{0}', space=vmem, size = 0x2000, scoped, tag = 'input window, operand 3']
    #allocation9 [shape = 's32[2]{0}', space=sflag, size = 0x8, scoped, tag = 'scoped memory for tpu_custom_call.1']
    #allocation10 [shape = 'u8[8192]{0}', space=vmem, size = 0x2000, scoped, tag = 'input window, operand 5']
    #allocation11 [shape = 'u8[8192]{0}', space=vmem, size = 0x2000, scoped, tag = 'output window, operand 0']
    %13 = vsyncpa [#allocation3], 0
    %s14 = scalar_lea.sflag [#allocation3], 1
    %15 = vsyncpa %s14, 0
    %16 = vsyncpa [#allocation6], 0
    %s17 = scalar_lea.sflag [#allocation6], 1
    %18 = vsyncpa %s17, 0
    %19 = vsyncpa [#allocation9], 0
    %s20 = scalar_lea.sflag [#allocation9], 1
    %21 = vsyncpa %s20, 0
    %22 = vsyncpa [#allocation4], 0
    %s23 = scalar_lea.sflag [#allocation4], 1
    %24 = vsyncpa %s23, 0
    loop: start=0, step=1, limit=10
    $region2: #{tpu_custom_call.1} parent=1 // loop_pre_header
      _
    $region3: #{tpu_custom_call.1} parent=1 // loop_header
      %s26 = sphi 0, %s30
      %p27 = scmp.ge.s32.totalorder %s26, 10
      %s33 = sphi 0, %s45
      %s34 = sphi 0, %s41
      %s35 = sphi 0, %s33
      %s36 = sphi 0, %s34
      %s37 = sphi 0, %s35
      %s38 = sphi 0, %s36
      %s48 = sphi 0, %s50
      %s51 = sphi 0, %s48
      %s52 = sphi 0, %s51
      %s68 = sphi 0, %s52
      %s74 = sphi 0, %s76
      %s77 = sphi 0, %s74
      %s78 = sphi 0, %s77
      %s94 = sphi 0, %s78
      %s100 = sphi 0, %s102
      %s103 = sphi 0, %s100
      %s104 = sphi 0, %s103
      %s120 = sphi 0, %s104
      %s126 = sphi 0, %s128
      %s129 = sphi 0, %s126
      %s130 = sphi 0, %s129
      %s146 = sphi 0, %s130
      %s152 = sphi 0, %s154
      %s155 = sphi 0, %s152
      %s156 = sphi 0, %s155
      %s172 = sphi 0, %s156
      %s178 = sphi 0, %s180
      %s181 = sphi 0, %s178
      %s182 = sphi 0, %s181
      %s198 = sphi 0, %s182
      %s204 = sphi 0, %s206
      %s207 = sphi 0, %s204
      %s208 = sphi 0, %s207
      %s224 = sphi 0, %s208
      %s230 = sphi 0, %s232
      %s233 = sphi 0, %s230
      %s234 = sphi 0, %s233
      %s250 = sphi 0, %s234
      %s258 = sphi 0, %s260
      %s261 = sphi 0, %s258
      %s262 = sphi 0, %s261
      %s278 = sphi 0, %s262
    $region4: #{tpu_custom_call.1} parent=1 // loop_header_branch
      %29 = sbr.rel (%p27) target = $region8
    $region5: #{tpu_custom_call.1} parent=1 // loop_body
      %s31 = ssub.s32 %s26, 1
      %s32 = ssub.s32 %s26, 2
      %s39 = sadd.s32 1, %s34
      %p40 = scmp.ge.s32.totalorder %s39, 4
      %s41 = scalar_select %p40, 0, %s39
      %s42 = sadd.s32 1, %s33
      %s43 = scalar_select %p40, %s42, %s33
      %p44 = scmp.ge.s32.totalorder %s43, 2
      %s45 = scalar_select %p44, 0, %s43
      %s46 = ssub.s32 %s33, %s45
      %p47 = scmp.eq.s32.totalorder %s46, 0
      %s49 = sadd.s32 %s48, 1
      %s50 = scalar_select %p47, %s48, %s49
      %p53 = pneg %p47
      %p54 = scmp.eq.s32.totalorder %s26, 7
      %p55 = por %p53, %p54
      %p56 = scmp.ne.s32.totalorder %s48, %s51
      %p57 = scmp.eq.s32.totalorder %s26, 0
      %p58 = por %p56, %p57
      %p59 = scmp.ne.s32.totalorder %s48, %s51
      %p60 = scmp.eq.s32.totalorder %s31, 7
      %p61 = por %p59, %p60
      %p62 = scmp.ne.s32.totalorder %s51, %s52
      %p63 = scmp.eq.s32.totalorder %s31, 0
      %p64 = por %p62, %p63
      %p65 = scmp.ne.s32.totalorder %s51, %s52
      %p66 = scmp.eq.s32.totalorder %s32, 7
      %p67 = por %p65, %p66
      %p69 = scmp.ne.s32.totalorder %s52, %s68
      %p70 = scmp.eq.s32.totalorder %s32, 0
      %p71 = por %p69, %p70
      %s72 = ssub.s32 %s34, %s41
      %p73 = scmp.eq.s32.totalorder %s72, 0
      %s75 = sadd.s32 %s74, 1
      %s76 = scalar_select %p73, %s74, %s75
      %p79 = pneg %p73
      %p80 = scmp.eq.s32.totalorder %s26, 7
      %p81 = por %p79, %p80
      %p82 = scmp.ne.s32.totalorder %s74, %s77
      %p83 = scmp.eq.s32.totalorder %s26, 0
      %p84 = por %p82, %p83
      %p85 = scmp.ne.s32.totalorder %s74, %s77
      %p86 = scmp.eq.s32.totalorder %s31, 7
      %p87 = por %p85, %p86
      %p88 = scmp.ne.s32.totalorder %s77, %s78
      %p89 = scmp.eq.s32.totalorder %s31, 0
      %p90 = por %p88, %p89
      %p91 = scmp.ne.s32.totalorder %s77, %s78
      %p92 = scmp.eq.s32.totalorder %s32, 7
      %p93 = por %p91, %p92
      %p95 = scmp.ne.s32.totalorder %s78, %s94
      %p96 = scmp.eq.s32.totalorder %s32, 0
      %p97 = por %p95, %p96
      %s98 = ssub.s32 %s34, %s41
      %p99 = scmp.eq.s32.totalorder %s98, 0
      %s101 = sadd.s32 %s100, 1
      %s102 = scalar_select %p99, %s100, %s101
      %p105 = pneg %p99
      %p106 = scmp.eq.s32.totalorder %s26, 7
      %p107 = por %p105, %p106
      %p108 = scmp.ne.s32.totalorder %s100, %s103
      %p109 = scmp.eq.s32.totalorder %s26, 0
      %p110 = por %p108, %p109
      %p111 = scmp.ne.s32.totalorder %s100, %s103
      %p112 = scmp.eq.s32.totalorder %s31, 7
      %p113 = por %p111, %p112
      %p114 = scmp.ne.s32.totalorder %s103, %s104
      %p115 = scmp.eq.s32.totalorder %s31, 0
      %p116 = por %p114, %p115
      %p117 = scmp.ne.s32.totalorder %s103, %s104
      %p118 = scmp.eq.s32.totalorder %s32, 7
      %p119 = por %p117, %p118
      %p121 = scmp.ne.s32.totalorder %s104, %s120
      %p122 = scmp.eq.s32.totalorder %s32, 0
      %p123 = por %p121, %p122
      %s124 = ssub.s32 %s34, %s41
      %p125 = scmp.eq.s32.totalorder %s124, 0
      %s127 = sadd.s32 %s126, 1
      %s128 = scalar_select %p125, %s126, %s127
      %p131 = pneg %p125
      %p132 = scmp.eq.s32.totalorder %s26, 7
      %p133 = por %p131, %p132
      %p134 = scmp.ne.s32.totalorder %s126, %s129
      %p135 = scmp.eq.s32.totalorder %s26, 0
      %p136 = por %p134, %p135
      %p137 = scmp.ne.s32.totalorder %s126, %s129
      %p138 = scmp.eq.s32.totalorder %s31, 7
      %p139 = por %p137, %p138
      %p140 = scmp.ne.s32.totalorder %s129, %s130
      %p141 = scmp.eq.s32.totalorder %s31, 0
      %p142 = por %p140, %p141
      %p143 = scmp.ne.s32.totalorder %s129, %s130
      %p144 = scmp.eq.s32.totalorder %s32, 7
      %p145 = por %p143, %p144
      %p147 = scmp.ne.s32.totalorder %s130, %s146
      %p148 = scmp.eq.s32.totalorder %s32, 0
      %p149 = por %p147, %p148
      %s150 = ssub.s32 %s34, %s41
      %p151 = scmp.eq.s32.totalorder %s150, 0
      %s153 = sadd.s32 %s152, 1
      %s154 = scalar_select %p151, %s152, %s153
      %p157 = pneg %p151
      %p158 = scmp.eq.s32.totalorder %s26, 7
      %p159 = por %p157, %p158
      %p160 = scmp.ne.s32.totalorder %s152, %s155
      %p161 = scmp.eq.s32.totalorder %s26, 0
      %p162 = por %p160, %p161
      %p163 = scmp.ne.s32.totalorder %s152, %s155
      %p164 = scmp.eq.s32.totalorder %s31, 7
      %p165 = por %p163, %p164
      %p166 = scmp.ne.s32.totalorder %s155, %s156
      %p167 = scmp.eq.s32.totalorder %s31, 0
      %p168 = por %p166, %p167
      %p169 = scmp.ne.s32.totalorder %s155, %s156
      %p170 = scmp.eq.s32.totalorder %s32, 7
      %p171 = por %p169, %p170
      %p173 = scmp.ne.s32.totalorder %s156, %s172
      %p174 = scmp.eq.s32.totalorder %s32, 0
      %p175 = por %p173, %p174
      %s176 = ssub.s32 %s34, %s41
      %p177 = scmp.eq.s32.totalorder %s176, 0
      %s179 = sadd.s32 %s178, 1
      %s180 = scalar_select %p177, %s178, %s179
      %p183 = pneg %p177
      %p184 = scmp.eq.s32.totalorder %s26, 7
      %p185 = por %p183, %p184
      %p186 = scmp.ne.s32.totalorder %s178, %s181
      %p187 = scmp.eq.s32.totalorder %s26, 0
      %p188 = por %p186, %p187
      %p189 = scmp.ne.s32.totalorder %s178, %s181
      %p190 = scmp.eq.s32.totalorder %s31, 7
      %p191 = por %p189, %p190
      %p192 = scmp.ne.s32.totalorder %s181, %s182
      %p193 = scmp.eq.s32.totalorder %s31, 0
      %p194 = por %p192, %p193
      %p195 = scmp.ne.s32.totalorder %s181, %s182
      %p196 = scmp.eq.s32.totalorder %s32, 7
      %p197 = por %p195, %p196
      %p199 = scmp.ne.s32.totalorder %s182, %s198
      %p200 = scmp.eq.s32.totalorder %s32, 0
      %p201 = por %p199, %p200
      %s202 = ssub.s32 %s34, %s41
      %p203 = scmp.eq.s32.totalorder %s202, 0
      %s205 = sadd.s32 %s204, 1
      %s206 = scalar_select %p203, %s204, %s205
      %p209 = pneg %p203
      %p210 = scmp.eq.s32.totalorder %s26, 7
      %p211 = por %p209, %p210
      %p212 = scmp.ne.s32.totalorder %s204, %s207
      %p213 = scmp.eq.s32.totalorder %s26, 0
      %p214 = por %p212, %p213
      %p215 = scmp.ne.s32.totalorder %s204, %s207
      %p216 = scmp.eq.s32.totalorder %s31, 7
      %p217 = por %p215, %p216
      %p218 = scmp.ne.s32.totalorder %s207, %s208
      %p219 = scmp.eq.s32.totalorder %s31, 0
      %p220 = por %p218, %p219
      %p221 = scmp.ne.s32.totalorder %s207, %s208
      %p222 = scmp.eq.s32.totalorder %s32, 7
      %p223 = por %p221, %p222
      %p225 = scmp.ne.s32.totalorder %s208, %s224
      %p226 = scmp.eq.s32.totalorder %s32, 0
      %p227 = por %p225, %p226
      %s228 = ssub.s32 %s33, %s45
      %p229 = scmp.eq.s32.totalorder %s228, 0
      %s231 = sadd.s32 %s230, 1
      %s232 = scalar_select %p229, %s230, %s231
      %p235 = pneg %p229
      %p236 = scmp.eq.s32.totalorder %s26, 7
      %p237 = por %p235, %p236
      %p238 = scmp.ne.s32.totalorder %s230, %s233
      %p239 = scmp.eq.s32.totalorder %s26, 0
      %p240 = por %p238, %p239
      %p241 = scmp.ne.s32.totalorder %s230, %s233
      %p242 = scmp.eq.s32.totalorder %s31, 7
      %p243 = por %p241, %p242
      %p244 = scmp.ne.s32.totalorder %s233, %s234
      %p245 = scmp.eq.s32.totalorder %s31, 0
      %p246 = por %p244, %p245
      %p247 = scmp.ne.s32.totalorder %s233, %s234
      %p248 = scmp.eq.s32.totalorder %s32, 7
      %p249 = por %p247, %p248
      %p251 = scmp.ne.s32.totalorder %s234, %s250
      %p252 = scmp.eq.s32.totalorder %s32, 0
      %p253 = por %p251, %p252
      %s254 = ssub.s32 %s33, %s45
      %s255 = ssub.s32 %s34, %s41
      %s256 = sor.u32 %s254, %s255
      %p257 = scmp.eq.s32.totalorder %s256, 0
      %s259 = sadd.s32 %s258, 1
      %s260 = scalar_select %p257, %s258, %s259
      %p263 = pneg %p257
      %p264 = scmp.eq.s32.totalorder %s26, 7
      %p265 = por %p263, %p264
      %p266 = scmp.ne.s32.totalorder %s258, %s261
      %p267 = scmp.eq.s32.totalorder %s26, 0
      %p268 = por %p266, %p267
      %p269 = scmp.ne.s32.totalorder %s258, %s261
      %p270 = scmp.eq.s32.totalorder %s31, 7
      %p271 = por %p269, %p270
      %p272 = scmp.ne.s32.totalorder %s261, %s262
      %p273 = scmp.eq.s32.totalorder %s31, 0
      %p274 = por %p272, %p273
      %p275 = scmp.ne.s32.totalorder %s261, %s262
      %p276 = scmp.eq.s32.totalorder %s32, 7
      %p277 = por %p275, %p276
      %p279 = scmp.ne.s32.totalorder %s262, %s278
      %p280 = scmp.eq.s32.totalorder %s32, 0
      %p281 = por %p279, %p280
      %p282 = scmp.le.s32.totalorder 1, %s26
      %p283 = scmp.lt.s32.totalorder %s26, 9
      %p284 = pnand %p282, %p283
      %p285 = pneg %p284
      // Predicated region
      $region9: #{tpu_custom_call.1} parent=5 // pred_check
        _
      $region10: #{tpu_custom_call.1} parent=5 // pred_check_branch
        %287 = sbr.rel (%p284) target = $region12
      $region11: #{tpu_custom_call.1} parent=5 // pred_region
        %s288 = ssub.s32 %s26, 1
      $region12: #{tpu_custom_call.1} parent=5 // pred_fallthru
        _
      %p289 = scmp.lt.s32.totalorder %s26, 8
      // Predicated region
      $region13: #{tpu_custom_call.1} parent=5 // pred_check
        %p290 = pneg %p289
      $region14: #{tpu_custom_call.1} parent=5 // pred_check_branch
        %292 = sbr.rel (%p290) target = $region16
      $region15: #{tpu_custom_call.1} parent=5 // pred_region
        // Predicated region
        $region17: #{tpu_custom_call.1} parent=15 // pred_check
          %p293 = pneg %p58
        $region18: #{tpu_custom_call.1} parent=15 // pred_check_branch
          %295 = sbr.rel (%p293) target = $region20
        $region19: #{tpu_custom_call.1} parent=15 // pred_region
          %s296 = sand.u32 %s48, 1
          %s297 = scalar_lea.sflag [#allocation3], %s296
          %s298 = sand.u32 %s48, 1
          %s299 = smul.addr %s298, 8
          %s300 = scalar_lea.vmem [#allocation2], %s299
          %s302 = ssub.s32 128, 128
          %303 = vsyncadd %s297, %s302
          %s304 = smul.addr %s33, 128
          %s305 = scalar_lea.hbm %s0, %s304
          %s307 = sshll.u32 %s300, 4
          %s308 = int_to_ptr.vmem [resolvable:$true] %s307
          %310 = dma.hbm_to_vmem [thread:$0]  %s305, 128, %s308, %s297
        $region20: #{tpu_custom_call.1} parent=15 // pred_fallthru
          _
        // Predicated region
        $region21: #{tpu_custom_call.1} parent=15 // pred_check
          %p311 = pneg %p84
        $region22: #{tpu_custom_call.1} parent=15 // pred_check_branch
          %313 = sbr.rel (%p311) target = $region24
        $region23: #{tpu_custom_call.1} parent=15 // pred_region
          %s314 = sand.u32 %s26, 1
          %s315 = scalar_lea.sflag [#allocation6], %s314
          %s316 = sand.u32 %s74, 1
          %s317 = smul.addr %s316, 8
          %s318 = scalar_lea.vmem [#allocation5], %s317
          %s320 = ssub.s32 128, 128
          %321 = vsyncadd %s315, %s320
          %s322 = smul.addr %s34, 128
          %s323 = scalar_lea.hbm %s1, %s322
          %s325 = sshll.u32 %s318, 4
          %s326 = int_to_ptr.vmem [resolvable:$true] %s325
          %328 = dma.hbm_to_vmem [thread:$0]  %s323, 128, %s326, %s315
        $region24: #{tpu_custom_call.1} parent=15 // pred_fallthru
          _
        // Predicated region
        $region25: #{tpu_custom_call.1} parent=15 // pred_check
          %p329 = pneg %p110
        $region26: #{tpu_custom_call.1} parent=15 // pred_check_branch
          %331 = sbr.rel (%p329) target = $region28
        $region27: #{tpu_custom_call.1} parent=15 // pred_region
          %s332 = sand.u32 %s26, 1
          %s333 = scalar_lea.sflag [#allocation6], %s332
          %s334 = sand.u32 %s100, 1
          %s335 = scalar_lea.vmem [#allocation7], %s334
          %s337 = ssub.s32 16, 16
          %338 = vsyncadd %s333, %s337
          %s339 = smul.addr %s34, 16
          %s340 = scalar_lea.hbm %s2, %s339
          %s342 = sshll.u32 %s335, 4
          %s343 = int_to_ptr.vmem [resolvable:$true] %s342
          %345 = dma.hbm_to_vmem [thread:$0]  %s340, 16, %s343, %s333
        $region28: #{tpu_custom_call.1} parent=15 // pred_fallthru
          _
        // Predicated region
        $region29: #{tpu_custom_call.1} parent=15 // pred_check
          %p346 = pneg %p136
        $region30: #{tpu_custom_call.1} parent=15 // pred_check_branch
          %348 = sbr.rel (%p346) target = $region32
        $region31: #{tpu_custom_call.1} parent=15 // pred_region
          %s349 = sand.u32 %s26, 1
          %s350 = scalar_lea.sflag [#allocation9], %s349
          %s351 = sand.u32 %s126, 1
          %s352 = smul.addr %s351, 8
          %s353 = scalar_lea.vmem [#allocation8], %s352
          %s355 = ssub.s32 128, 128
          %356 = vsyncadd %s350, %s355
          %s357 = smul.addr %s34, 128
          %s358 = scalar_lea.hbm %s3, %s357
          %s360 = sshll.u32 %s353, 4
          %s361 = int_to_ptr.vmem [resolvable:$true] %s360
          %363 = dma.hbm_to_vmem [thread:$0]  %s358, 128, %s361, %s350
        $region32: #{tpu_custom_call.1} parent=15 // pred_fallthru
          _
        // Predicated region
        $region33: #{tpu_custom_call.1} parent=15 // pred_check
          %p364 = pneg %p162
        $region34: #{tpu_custom_call.1} parent=15 // pred_check_branch
          %366 = sbr.rel (%p364) target = $region36
        $region35: #{tpu_custom_call.1} parent=15 // pred_region
          %p367 = scmp.lt.s32.totalorder %s34, 3
          %s368 = scalar_select %p367, %s34, 3
          %s369 = scalar_lea.vmem %s4, %s368
        $region36: #{tpu_custom_call.1} parent=15 // pred_fallthru
          _
        // Predicated region
        $region37: #{tpu_custom_call.1} parent=15 // pred_check
          %p370 = pneg %p188
        $region38: #{tpu_custom_call.1} parent=15 // pred_check_branch
          %372 = sbr.rel (%p370) target = $region40
        $region39: #{tpu_custom_call.1} parent=15 // pred_region
          %s373 = sand.u32 %s26, 1
          %s374 = scalar_lea.sflag [#allocation9], %s373
          %s375 = sand.u32 %s178, 1
          %s376 = smul.addr %s375, 8
          %s377 = scalar_lea.vmem [#allocation10], %s376
          %s379 = ssub.s32 128, 128
          %380 = vsyncadd %s374, %s379
          %s381 = smul.addr %s34, 128
          %s382 = scalar_lea.hbm %s5, %s381
          %s384 = sshll.u32 %s377, 4
          %s385 = int_to_ptr.vmem [resolvable:$true] %s384
          %387 = dma.hbm_to_vmem [thread:$0]  %s382, 128, %s385, %s374
        $region40: #{tpu_custom_call.1} parent=15 // pred_fallthru
          _
        // Predicated region
        $region41: #{tpu_custom_call.1} parent=15 // pred_check
          %p388 = pneg %p214
        $region42: #{tpu_custom_call.1} parent=15 // pred_check_branch
          %390 = sbr.rel (%p388) target = $region44
        $region43: #{tpu_custom_call.1} parent=15 // pred_region
          %p391 = scmp.lt.s32.totalorder %s34, 3
          %s392 = scalar_select %p391, %s34, 3
          %s393 = scalar_lea.vmem %s6, %s392
        $region44: #{tpu_custom_call.1} parent=15 // pred_fallthru
          _
        // Predicated region
        $region45: #{tpu_custom_call.1} parent=15 // pred_check
          %p394 = pneg %p240
        $region46: #{tpu_custom_call.1} parent=15 // pred_check_branch
          %396 = sbr.rel (%p394) target = $region48
        $region47: #{tpu_custom_call.1} parent=15 // pred_region
          %p397 = scmp.lt.s32.totalorder %s33, 1
          %s398 = scalar_select %p397, %s33, 1
          %s399 = scalar_lea.vmem %s7, %s398
        $region48: #{tpu_custom_call.1} parent=15 // pred_fallthru
          _
      $region16: #{tpu_custom_call.1} parent=5 // pred_fallthru
        _
      %p400 = scmp.le.s32.totalorder 1, %s26
      %p401 = scmp.lt.s32.totalorder %s26, 9
      %p402 = pnand %p400, %p401
      %p403 = pneg %p402
      // Predicated region
      $region49: #{tpu_custom_call.1} parent=5 // pred_check
        _
      $region50: #{tpu_custom_call.1} parent=5 // pred_check_branch
        %405 = sbr.rel (%p402) target = $region52
      $region51: #{tpu_custom_call.1} parent=5 // pred_region
        %s406 = ssub.s32 %s26, 1
        %s407 = sand.u32 %s51, 1
        %s408 = scalar_lea.sflag [#allocation3], %s407
        %s409 = sand.u32 %s51, 1
        %s410 = smul.addr %s409, 8
        %s411 = scalar_lea.vmem [#allocation2], %s410
        // Predicated region
        $region53: #{tpu_custom_call.1} parent=51 // pred_check
          %p412 = pneg %p64
        $region54: #{tpu_custom_call.1} parent=51 // pred_check_branch
          %414 = sbr.rel (%p412) target = $region56
        $region55: #{tpu_custom_call.1} parent=51 // pred_region
          %415 = dma.done %s408, 128
        $region56: #{tpu_custom_call.1} parent=51 // pred_fallthru
          _
        %s416 = sand.u32 %s31, 1
        %s417 = scalar_lea.sflag [#allocation6], %s416
        %s418 = sand.u32 %s77, 1
        %s419 = smul.addr %s418, 8
        %s420 = scalar_lea.vmem [#allocation5], %s419
        // Predicated region
        $region57: #{tpu_custom_call.1} parent=51 // pred_check
          %p421 = pneg %p90
        $region58: #{tpu_custom_call.1} parent=51 // pred_check_branch
          %423 = sbr.rel (%p421) target = $region60
        $region59: #{tpu_custom_call.1} parent=51 // pred_region
          %424 = dma.done %s417, 128
        $region60: #{tpu_custom_call.1} parent=51 // pred_fallthru
          _
        %s425 = sand.u32 %s31, 1
        %s426 = scalar_lea.sflag [#allocation6], %s425
        %s427 = sand.u32 %s103, 1
        %s428 = scalar_lea.vmem [#allocation7], %s427
        // Predicated region
        $region61: #{tpu_custom_call.1} parent=51 // pred_check
          %p429 = pneg %p116
        $region62: #{tpu_custom_call.1} parent=51 // pred_check_branch
          %431 = sbr.rel (%p429) target = $region64
        $region63: #{tpu_custom_call.1} parent=51 // pred_region
          %432 = dma.done %s426, 16
        $region64: #{tpu_custom_call.1} parent=51 // pred_fallthru
          _
        %s433 = sand.u32 %s31, 1
        %s434 = scalar_lea.sflag [#allocation9], %s433
        %s435 = sand.u32 %s129, 1
        %s436 = smul.addr %s435, 8
        %s437 = scalar_lea.vmem [#allocation8], %s436
        // Predicated region
        $region65: #{tpu_custom_call.1} parent=51 // pred_check
          %p438 = pneg %p142
        $region66: #{tpu_custom_call.1} parent=51 // pred_check_branch
          %440 = sbr.rel (%p438) target = $region68
        $region67: #{tpu_custom_call.1} parent=51 // pred_region
          %441 = dma.done %s434, 128
        $region68: #{tpu_custom_call.1} parent=51 // pred_fallthru
          _
        %s442 = sand.u32 %s31, 1
        %s443 = scalar_lea.sflag [#allocation9], %s442
        %s444 = sand.u32 %s181, 1
        %s445 = smul.addr %s444, 8
        %s446 = scalar_lea.vmem [#allocation10], %s445
        // Predicated region
        $region69: #{tpu_custom_call.1} parent=51 // pred_check
          %p447 = pneg %p194
        $region70: #{tpu_custom_call.1} parent=51 // pred_check_branch
          %449 = sbr.rel (%p447) target = $region72
        $region71: #{tpu_custom_call.1} parent=51 // pred_region
          %450 = dma.done %s443, 128
        $region72: #{tpu_custom_call.1} parent=51 // pred_fallthru
          _
        %s451 = sand.u32 %s51, 1
        %s452 = scalar_lea.sflag [#allocation3], %s451
        %s453 = sand.u32 %s51, 1
        %s454 = smul.addr %s453, 8
        %s455 = scalar_lea.vmem [#allocation2], %s454
        %p456 = pneg %p64
        %p457 = pneg %p61
        %s458 = sand.u32 %s31, 1
        %s459 = scalar_lea.sflag [#allocation6], %s458
        %s460 = sand.u32 %s77, 1
        %s461 = smul.addr %s460, 8
        %s462 = scalar_lea.vmem [#allocation5], %s461
        %p463 = pneg %p90
        %p464 = pneg %p87
        %s465 = sand.u32 %s31, 1
        %s466 = scalar_lea.sflag [#allocation6], %s465
        %s467 = sand.u32 %s103, 1
        %s468 = scalar_lea.vmem [#allocation7], %s467
        %p469 = pneg %p116
        %p470 = pneg %p113
        %s471 = sand.u32 %s31, 1
        %s472 = scalar_lea.sflag [#allocation9], %s471
        %s473 = sand.u32 %s129, 1
        %s474 = smul.addr %s473, 8
        %s475 = scalar_lea.vmem [#allocation8], %s474
        %p476 = pneg %p142
        %p477 = pneg %p139
        %p478 = scmp.lt.s32.totalorder %s36, 3
        %s479 = scalar_select %p478, %s36, 3
        %s480 = scalar_lea.vmem %s4, %s479
        %p481 = pneg %p168
        %p482 = pneg %p165
        %s483 = sand.u32 %s31, 1
        %s484 = scalar_lea.sflag [#allocation9], %s483
        %s485 = sand.u32 %s181, 1
        %s486 = smul.addr %s485, 8
        %s487 = scalar_lea.vmem [#allocation10], %s486
        %p488 = pneg %p194
        %p489 = pneg %p191
        %p490 = scmp.lt.s32.totalorder %s36, 3
        %s491 = scalar_select %p490, %s36, 3
        %s492 = scalar_lea.vmem %s6, %s491
        %p493 = pneg %p220
        %p494 = pneg %p217
        %p495 = scmp.lt.s32.totalorder %s35, 1
        %s496 = scalar_select %p495, %s35, 1
        %s497 = scalar_lea.vmem %s7, %s496
        %p498 = pneg %p246
        %p499 = pneg %p243
        %p500 = pneg %p274
        %p501 = pneg %p271
        %s502 = sand.u32 %s261, 1
        %s503 = scalar_lea.sflag [#allocation4], %s502
        %s504 = sand.u32 %s261, 1
        %s505 = smul.addr %s504, 8
        %s506 = scalar_lea.vmem [#allocation11], %s505
        %p507 = scmp.lt.s32.totalorder %s36, 3
        %s508 = scalar_select %p507, %s36, 3
        %s509 = scalar_lea.vmem %s4, %s508
        %p510 = scmp.lt.s32.totalorder %s36, 3
        %s511 = scalar_select %p510, %s36, 3
        %s512 = scalar_lea.vmem %s6, %s511
        %p513 = scmp.lt.s32.totalorder %s35, 1
        %s514 = scalar_select %p513, %s35, 1
        %s515 = scalar_lea.vmem %s7, %s514
        %v516 = vld [vmem:[%s411] sm:$0xff]
        %v517 = vld [vmem:[%s420] sm:$0xff]
        %v518 = vld [vmem:[%s428] sm:$0x1]
        %v520 = vlaneseq
        %v521 = vshrl.u32 %v520, 7
        %v522 = vsub.s32 0, %v521
        %v523 = vrot.slane %v518, %v522
        %vm525 = vcmask 261120
        %v527 = vsel %vm525, %v516, 0
        %v530 = vsel %vm525, %v517, 0
        %532 = vmatprep.subr.mxu0 0.0
        %533 = vmatpush1.xpose.msra.mxu0 0.0
        %534 = vmatprep.subr.mxu0 0.0
        %535 = vmatpush1.xpose.msra.mxu0 0.0
        %536 = vmatprep.subr.mxu0 0.0
        %537 = vmatpush1.xpose.msra.mxu0 0.0
        %538 = vmatprep.subr.mxu0 0.0
        %539 = vmatpush1.xpose.msra.mxu0 0.0
        %540 = vmatprep.subr.mxu0 0.0
        %541 = vmatpush1.xpose.msra.mxu0 0.0
        %542 = vmatprep.subr.mxu0 0.0
        %543 = vmatpush1.xpose.msra.mxu0 0.0
        %544 = vmatprep.subr.mxu0 0.0
        %545 = vmatpush1.xpose.msra.mxu0 0.0
        %546 = vmatprep.subr.mxu0 0.0
        %547 = vmatpush1.xpose.msra.mxu0 0.0
        %548 = vmatprep.subr.mxu0 0.0
        %549 = vmatpush1.xpose.msra.mxu0 0.0
        %550 = vmatprep.subr.mxu0 0.0
        %551 = vmatpush1.xpose.msra.mxu0 0.0
        %552 = vmatprep.subr.mxu0 0.0
        %553 = vmatpush1.xpose.msra.mxu0 0.0
        %554 = vmatprep.subr.mxu0 0.0
        %555 = vmatpush1.xpose.msra.mxu0 0.0
        %556 = vmatprep.subr.mxu0 0.0
        %557 = vmatpush1.xpose.msra.mxu0 0.0
        %558 = vmatprep.subr.mxu0 0.0
        %559 = vmatpush1.xpose.msra.mxu0 0.0
        %560 = vmatprep.subr.mxu0 0.0
        %561 = vmatpush1.xpose.msra.mxu0 0.0
        %562 = vmatprep.subr.mxu0 0.0
        %563 = vmatpush1.xpose.msra.mxu0 %v530
        %564 = vmatprep.subr.mxu0 0.0
        %565 = vmatpush2.xpose.msra.mxu0 0.0
        %566 = vmatprep.subr.mxu0 0.0
        %567 = vmatpush2.xpose.msra.mxu0 0.0
        %568 = vmatprep.subr.mxu0 0.0
        %569 = vmatpush2.xpose.msra.mxu0 0.0
        %570 = vmatprep.subr.mxu0 0.0
        %571 = vmatpush2.xpose.msra.mxu0 0.0
        %572 = vmatprep.subr.mxu0 0.0
        %573 = vmatpush2.xpose.msra.mxu0 0.0
        %574 = vmatprep.subr.mxu0 0.0
        %575 = vmatpush2.xpose.msra.mxu0 0.0
        %576 = vmatprep.subr.mxu0 0.0
        %577 = vmatpush2.xpose.msra.mxu0 0.0
        %578 = vmatprep.subr.mxu0 0.0
        %579 = vmatpush2.xpose.msra.mxu0 0.0
        %580 = vmatprep.subr.mxu0 0.0
        %581 = vmatpush2.xpose.msra.mxu0 0.0
        %582 = vmatprep.subr.mxu0 0.0
        %583 = vmatpush2.xpose.msra.mxu0 0.0
        %584 = vmatprep.subr.mxu0 0.0
        %585 = vmatpush2.xpose.msra.mxu0 0.0
        %586 = vmatprep.subr.mxu0 0.0
        %587 = vmatpush2.xpose.msra.mxu0 0.0
        %588 = vmatprep.subr.mxu0 0.0
        %589 = vmatpush2.xpose.msra.mxu0 0.0
        %590 = vmatprep.subr.mxu0 0.0
        %591 = vmatpush2.xpose.msra.mxu0 0.0
        %592 = vmatprep.subr.mxu0 0.0
        %593 = vmatpush2.xpose.msra.mxu0 0.0
        %594 = vmatprep.subr.mxu0 0.0
        %595 = vmatpush2.xpose.msra.mxu0 0.0
        %596 = vmatprep.mubr.f32.mxu0 0.0
        %597 = vmatmul.mubr.f32.gmra.mxu0 %v527
        %v598 = vpop.f32.mrf.mxu0
        %v599 = vadd.f32 %v523, %v598
        %v600 = vpop.f32.mrf.mxu0
        %601 = vdwg.mxu0
        %v602 = vld [vmem:[%s437] sm:$0xff]
        %v603 = vld [vmem:[%s509] sm:$0x1]
        %v605 = vlaneseq
        %v606 = vshrl.u32 %v605, 7
        %v607 = vsub.s32 0, %v606
        %v608 = vrot.slane %v603, %v607
        %v611 = vsel %vm525, %v602, 0
        %613 = vmatprep.subr.mxu0 0.0
        %614 = vmatpush1.xpose.msra.mxu0 0.0
        %615 = vmatprep.subr.mxu0 0.0
        %616 = vmatpush1.xpose.msra.mxu0 0.0
        %617 = vmatprep.subr.mxu0 0.0
        %618 = vmatpush1.xpose.msra.mxu0 0.0
        %619 = vmatprep.subr.mxu0 0.0
        %620 = vmatpush1.xpose.msra.mxu0 0.0
        %621 = vmatprep.subr.mxu0 0.0
        %622 = vmatpush1.xpose.msra.mxu0 0.0
        %623 = vmatprep.subr.mxu0 0.0
        %624 = vmatpush1.xpose.msra.mxu0 0.0
        %625 = vmatprep.subr.mxu0 0.0
        %626 = vmatpush1.xpose.msra.mxu0 0.0
        %627 = vmatprep.subr.mxu0 0.0
        %628 = vmatpush1.xpose.msra.mxu0 0.0
        %629 = vmatprep.subr.mxu0 0.0
        %630 = vmatpush1.xpose.msra.mxu0 0.0
        %631 = vmatprep.subr.mxu0 0.0
        %632 = vmatpush1.xpose.msra.mxu0 0.0
        %633 = vmatprep.subr.mxu0 0.0
        %634 = vmatpush1.xpose.msra.mxu0 0.0
        %635 = vmatprep.subr.mxu0 0.0
        %636 = vmatpush1.xpose.msra.mxu0 0.0
        %637 = vmatprep.subr.mxu0 0.0
        %638 = vmatpush1.xpose.msra.mxu0 0.0
        %639 = vmatprep.subr.mxu0 0.0
        %640 = vmatpush1.xpose.msra.mxu0 0.0
        %641 = vmatprep.subr.mxu0 0.0
        %642 = vmatpush1.xpose.msra.mxu0 0.0
        %643 = vmatprep.subr.mxu0 0.0
        %644 = vmatpush1.xpose.msra.mxu0 %v611
        %645 = vmatprep.subr.mxu0 0.0
        %646 = vmatpush2.xpose.msra.mxu0 0.0
        %647 = vmatprep.subr.mxu0 0.0
        %648 = vmatpush2.xpose.msra.mxu0 0.0
        %649 = vmatprep.subr.mxu0 0.0
        %650 = vmatpush2.xpose.msra.mxu0 0.0
        %651 = vmatprep.subr.mxu0 0.0
        %652 = vmatpush2.xpose.msra.mxu0 0.0
        %653 = vmatprep.subr.mxu0 0.0
        %654 = vmatpush2.xpose.msra.mxu0 0.0
        %655 = vmatprep.subr.mxu0 0.0
        %656 = vmatpush2.xpose.msra.mxu0 0.0
        %657 = vmatprep.subr.mxu0 0.0
        %658 = vmatpush2.xpose.msra.mxu0 0.0
        %659 = vmatprep.subr.mxu0 0.0
        %660 = vmatpush2.xpose.msra.mxu0 0.0
        %661 = vmatprep.subr.mxu0 0.0
        %662 = vmatpush2.xpose.msra.mxu0 0.0
        %663 = vmatprep.subr.mxu0 0.0
        %664 = vmatpush2.xpose.msra.mxu0 0.0
        %665 = vmatprep.subr.mxu0 0.0
        %666 = vmatpush2.xpose.msra.mxu0 0.0
        %667 = vmatprep.subr.mxu0 0.0
        %668 = vmatpush2.xpose.msra.mxu0 0.0
        %669 = vmatprep.subr.mxu0 0.0
        %670 = vmatpush2.xpose.msra.mxu0 0.0
        %671 = vmatprep.subr.mxu0 0.0
        %672 = vmatpush2.xpose.msra.mxu0 0.0
        %673 = vmatprep.subr.mxu0 0.0
        %674 = vmatpush2.xpose.msra.mxu0 0.0
        %675 = vmatprep.subr.mxu0 0.0
        %676 = vmatpush2.xpose.msra.mxu0 0.0
        %677 = vmatprep.mubr.f32.mxu0 0.0
        %678 = vmatmul.mubr.f32.gmra.mxu0 %v527
        %v679 = vpop.f32.mrf.mxu0
        %v680 = vadd.f32 %v608, %v679
        %v681 = vpop.f32.mrf.mxu0
        %682 = vdwg.mxu0
        %v683 = vld [vmem:[%s446] sm:$0xff]
        %v684 = vld [vmem:[%s512] sm:$0x1]
        %v686 = vlaneseq
        %v687 = vshrl.u32 %v686, 7
        %v688 = vsub.s32 0, %v687
        %v689 = vrot.slane %v684, %v688
        %v692 = vsel %vm525, %v683, 0
        %694 = vmatprep.subr.mxu0 0.0
        %695 = vmatpush1.xpose.msra.mxu0 0.0
        %696 = vmatprep.subr.mxu0 0.0
        %697 = vmatpush1.xpose.msra.mxu0 0.0
        %698 = vmatprep.subr.mxu0 0.0
        %699 = vmatpush1.xpose.msra.mxu0 0.0
        %700 = vmatprep.subr.mxu0 0.0
        %701 = vmatpush1.xpose.msra.mxu0 0.0
        %702 = vmatprep.subr.mxu0 0.0
        %703 = vmatpush1.xpose.msra.mxu0 0.0
        %704 = vmatprep.subr.mxu0 0.0
        %705 = vmatpush1.xpose.msra.mxu0 0.0
        %706 = vmatprep.subr.mxu0 0.0
        %707 = vmatpush1.xpose.msra.mxu0 0.0
        %708 = vmatprep.subr.mxu0 0.0
        %709 = vmatpush1.xpose.msra.mxu0 0.0
        %710 = vmatprep.subr.mxu0 0.0
        %711 = vmatpush1.xpose.msra.mxu0 0.0
        %712 = vmatprep.subr.mxu0 0.0
        %713 = vmatpush1.xpose.msra.mxu0 0.0
        %714 = vmatprep.subr.mxu0 0.0
        %715 = vmatpush1.xpose.msra.mxu0 0.0
        %716 = vmatprep.subr.mxu0 0.0
        %717 = vmatpush1.xpose.msra.mxu0 0.0
        %718 = vmatprep.subr.mxu0 0.0
        %719 = vmatpush1.xpose.msra.mxu0 0.0
        %720 = vmatprep.subr.mxu0 0.0
        %721 = vmatpush1.xpose.msra.mxu0 0.0
        %722 = vmatprep.subr.mxu0 0.0
        %723 = vmatpush1.xpose.msra.mxu0 0.0
        %724 = vmatprep.subr.mxu0 0.0
        %725 = vmatpush1.xpose.msra.mxu0 %v692
        %726 = vmatprep.subr.mxu0 0.0
        %727 = vmatpush2.xpose.msra.mxu0 0.0
        %728 = vmatprep.subr.mxu0 0.0
        %729 = vmatpush2.xpose.msra.mxu0 0.0
        %730 = vmatprep.subr.mxu0 0.0
        %731 = vmatpush2.xpose.msra.mxu0 0.0
        %732 = vmatprep.subr.mxu0 0.0
        %733 = vmatpush2.xpose.msra.mxu0 0.0
        %734 = vmatprep.subr.mxu0 0.0
        %735 = vmatpush2.xpose.msra.mxu0 0.0
        %736 = vmatprep.subr.mxu0 0.0
        %737 = vmatpush2.xpose.msra.mxu0 0.0
        %738 = vmatprep.subr.mxu0 0.0
        %739 = vmatpush2.xpose.msra.mxu0 0.0
        %740 = vmatprep.subr.mxu0 0.0
        %741 = vmatpush2.xpose.msra.mxu0 0.0
        %742 = vmatprep.subr.mxu0 0.0
        %743 = vmatpush2.xpose.msra.mxu0 0.0
        %744 = vmatprep.subr.mxu0 0.0
        %745 = vmatpush2.xpose.msra.mxu0 0.0
        %746 = vmatprep.subr.mxu0 0.0
        %747 = vmatpush2.xpose.msra.mxu0 0.0
        %748 = vmatprep.subr.mxu0 0.0
        %749 = vmatpush2.xpose.msra.mxu0 0.0
        %750 = vmatprep.subr.mxu0 0.0
        %751 = vmatpush2.xpose.msra.mxu0 0.0
        %752 = vmatprep.subr.mxu0 0.0
        %753 = vmatpush2.xpose.msra.mxu0 0.0
        %754 = vmatprep.subr.mxu0 0.0
        %755 = vmatpush2.xpose.msra.mxu0 0.0
        %756 = vmatprep.subr.mxu0 0.0
        %757 = vmatpush2.xpose.msra.mxu0 0.0
        %758 = vmatprep.mubr.f32.mxu0 0.0
        %759 = vmatmul.mubr.f32.gmra.mxu0 %v527
        %v760 = vpop.f32.mrf.mxu0
        %v761 = vadd.f32 %v689, %v760
        %v762 = vpop.f32.mrf.mxu0
        %763 = vdwg.mxu0
        %vm764 = vcmask 64512
        %v766 = vsel %vm764, %v599, 0
        %v769 = vsel %vm764, %v680, 0
        %771 = vmatprep.subr.mxu0 0.0
        %772 = vmatpush1.xpose.msra.mxu0 0.0
        %773 = vmatprep.subr.mxu0 0.0
        %774 = vmatpush1.xpose.msra.mxu0 0.0
        %775 = vmatprep.subr.mxu0 0.0
        %776 = vmatpush1.xpose.msra.mxu0 0.0
        %777 = vmatprep.subr.mxu0 0.0
        %778 = vmatpush1.xpose.msra.mxu0 0.0
        %779 = vmatprep.subr.mxu0 0.0
        %780 = vmatpush1.xpose.msra.mxu0 0.0
        %781 = vmatprep.subr.mxu0 0.0
        %782 = vmatpush1.xpose.msra.mxu0 0.0
        %783 = vmatprep.subr.mxu0 0.0
        %784 = vmatpush1.xpose.msra.mxu0 0.0
        %785 = vmatprep.subr.mxu0 0.0
        %786 = vmatpush1.xpose.msra.mxu0 0.0
        %787 = vmatprep.subr.mxu0 0.0
        %788 = vmatpush1.xpose.msra.mxu0 0.0
        %789 = vmatprep.subr.mxu0 0.0
        %790 = vmatpush1.xpose.msra.mxu0 0.0
        %791 = vmatprep.subr.mxu0 0.0
        %792 = vmatpush1.xpose.msra.mxu0 0.0
        %793 = vmatprep.subr.mxu0 0.0
        %794 = vmatpush1.xpose.msra.mxu0 0.0
        %795 = vmatprep.subr.mxu0 0.0
        %796 = vmatpush1.xpose.msra.mxu0 0.0
        %797 = vmatprep.subr.mxu0 0.0
        %798 = vmatpush1.xpose.msra.mxu0 0.0
        %799 = vmatprep.subr.mxu0 0.0
        %800 = vmatpush1.xpose.msra.mxu0 0.0
        %801 = vmatprep.subr.mxu0 0.0
        %802 = vmatpush1.xpose.msra.mxu0 %v769
        %803 = vmatprep.subr.mxu0 0.0
        %804 = vmatpush2.xpose.msra.mxu0 0.0
        %805 = vmatprep.subr.mxu0 0.0
        %806 = vmatpush2.xpose.msra.mxu0 0.0
        %807 = vmatprep.subr.mxu0 0.0
        %808 = vmatpush2.xpose.msra.mxu0 0.0
        %809 = vmatprep.subr.mxu0 0.0
        %810 = vmatpush2.xpose.msra.mxu0 0.0
        %811 = vmatprep.subr.mxu0 0.0
        %812 = vmatpush2.xpose.msra.mxu0 0.0
        %813 = vmatprep.subr.mxu0 0.0
        %814 = vmatpush2.xpose.msra.mxu0 0.0
        %815 = vmatprep.subr.mxu0 0.0
        %816 = vmatpush2.xpose.msra.mxu0 0.0
        %817 = vmatprep.subr.mxu0 0.0
        %818 = vmatpush2.xpose.msra.mxu0 0.0
        %819 = vmatprep.subr.mxu0 0.0
        %820 = vmatpush2.xpose.msra.mxu0 0.0
        %821 = vmatprep.subr.mxu0 0.0
        %822 = vmatpush2.xpose.msra.mxu0 0.0
        %823 = vmatprep.subr.mxu0 0.0
        %824 = vmatpush2.xpose.msra.mxu0 0.0
        %825 = vmatprep.subr.mxu0 0.0
        %826 = vmatpush2.xpose.msra.mxu0 0.0
        %827 = vmatprep.subr.mxu0 0.0
        %828 = vmatpush2.xpose.msra.mxu0 0.0
        %829 = vmatprep.subr.mxu0 0.0
        %830 = vmatpush2.xpose.msra.mxu0 0.0
        %831 = vmatprep.subr.mxu0 0.0
        %832 = vmatpush2.xpose.msra.mxu0 0.0
        %833 = vmatprep.subr.mxu0 0.0
        %834 = vmatpush2.xpose.msra.mxu0 0.0
        %835 = vmatprep.mubr.f32.mxu0 0.0
        %836 = vmatmul.mubr.f32.gmra.mxu0 %v766
        %v837 = vpop.f32.mrf.mxu0
        %v838 = vadd.f32 0.0, %v837
        %v839 = vpop.f32.mrf.mxu0
        %840 = vdwg.mxu0
        %v841 = vmul.f32 %v838, 0.35355338
        %v842 = vld [vmem:[%s515] sm:$0x1]
        %v844 = vlaneseq
        %v845 = vshrl.u32 %v844, 7
        %v846 = vsub.s32 0, %v845
        %v847 = vrot.slane %v842, %v846
        %v849 = vadd.f32 %v841, %v847
        %v850 = vsel %vm764, %v849, -inf
        %851 = vmax.xlane.f32.xlu0 %v850
        %v852 = vpop.xlane.xlu0 %851
        %v853 = vsub.f32 %v849, %v852
        %v854 = vmul.f32 %v853, 1.442695
        %v855 = vpow.pop %v854
        %v856 = vsel %vm764, %v855, 0.0
        %857 = vadd.xlane.f32.xlu0 %v856
        %v858 = vpop.xlane.xlu0 %857
        %v859 = vrcp.pop %v858
        %v860 = vmul.f32 %v855, %v859
        %v862 = vsel %vm764, %v860, 0
        %864 = vmatprep.subr.mxu0 0.0
        %865 = vmatpush1.msra.mxu0 0.0
        %866 = vmatprep.subr.mxu0 0.0
        %867 = vmatpush1.msra.mxu0 0.0
        %868 = vmatprep.subr.mxu0 0.0
        %869 = vmatpush1.msra.mxu0 0.0
        %870 = vmatprep.subr.mxu0 0.0
        %871 = vmatpush1.msra.mxu0 0.0
        %872 = vmatprep.subr.mxu0 0.0
        %873 = vmatpush1.msra.mxu0 0.0
        %874 = vmatprep.subr.mxu0 0.0
        %875 = vmatpush1.msra.mxu0 0.0
        %876 = vmatprep.subr.mxu0 0.0
        %877 = vmatpush1.msra.mxu0 0.0
        %878 = vmatprep.subr.mxu0 0.0
        %879 = vmatpush1.msra.mxu0 0.0
        %880 = vmatprep.subr.mxu0 0.0
        %881 = vmatpush1.msra.mxu0 0.0
        %882 = vmatprep.subr.mxu0 0.0
        %883 = vmatpush1.msra.mxu0 0.0
        %884 = vmatprep.subr.mxu0 0.0
        %885 = vmatpush1.msra.mxu0 0.0
        %886 = vmatprep.subr.mxu0 0.0
        %887 = vmatpush1.msra.mxu0 0.0
        %888 = vmatprep.subr.mxu0 0.0
        %889 = vmatpush1.msra.mxu0 0.0
        %890 = vmatprep.subr.mxu0 0.0
        %891 = vmatpush1.msra.mxu0 0.0
        %892 = vmatprep.subr.mxu0 0.0
        %893 = vmatpush1.msra.mxu0 0.0
        %894 = vmatprep.subr.mxu0 0.0
        %895 = vmatpush1.msra.mxu0 %v761
        %896 = vmatprep.subr.mxu0 0.0
        %897 = vmatpush2.msra.mxu0 0.0
        %898 = vmatprep.subr.mxu0 0.0
        %899 = vmatpush2.msra.mxu0 0.0
        %900 = vmatprep.subr.mxu0 0.0
        %901 = vmatpush2.msra.mxu0 0.0
        %902 = vmatprep.subr.mxu0 0.0
        %903 = vmatpush2.msra.mxu0 0.0
        %904 = vmatprep.subr.mxu0 0.0
        %905 = vmatpush2.msra.mxu0 0.0
        %906 = vmatprep.subr.mxu0 0.0
        %907 = vmatpush2.msra.mxu0 0.0
        %908 = vmatprep.subr.mxu0 0.0
        %909 = vmatpush2.msra.mxu0 0.0
        %910 = vmatprep.subr.mxu0 0.0
        %911 = vmatpush2.msra.mxu0 0.0
        %912 = vmatprep.subr.mxu0 0.0
        %913 = vmatpush2.msra.mxu0 0.0
        %914 = vmatprep.subr.mxu0 0.0
        %915 = vmatpush2.msra.mxu0 0.0
        %916 = vmatprep.subr.mxu0 0.0
        %917 = vmatpush2.msra.mxu0 0.0
        %918 = vmatprep.subr.mxu0 0.0
        %919 = vmatpush2.msra.mxu0 0.0
        %920 = vmatprep.subr.mxu0 0.0
        %921 = vmatpush2.msra.mxu0 0.0
        %922 = vmatprep.subr.mxu0 0.0
        %923 = vmatpush2.msra.mxu0 0.0
        %924 = vmatprep.subr.mxu0 0.0
        %925 = vmatpush2.msra.mxu0 0.0
        %926 = vmatprep.subr.mxu0 0.0
        %927 = vmatpush2.msra.mxu0 0.0
        %928 = vmatprep.mubr.f32.mxu0 0.0
        %929 = vmatmul.mubr.f32.gmra.mxu0 %v862
        %v930 = vpop.f32.mrf.mxu0
        %v931 = vadd.f32 0.0, %v930
        %v932 = vpop.f32.mrf.mxu0
        %933 = vdwg.mxu0
        %934 = vst.msk [vmem:[%s506] sm:$0xff] %vm764, %v931
        %s935 = sand.u32 %s261, 1
        %s936 = scalar_lea.sflag [#allocation4], %s935
        %s937 = sand.u32 %s261, 1
        %s938 = smul.addr %s937, 8
        %s939 = scalar_lea.vmem [#allocation11], %s938
        // Predicated region
        $region73: #{tpu_custom_call.1} parent=51 // pred_check
          %p940 = pneg %p271
        $region74: #{tpu_custom_call.1} parent=51 // pred_check_branch
          %942 = sbr.rel (%p940) target = $region76
        $region75: #{tpu_custom_call.1} parent=51 // pred_region
          %s944 = ssub.s32 128, 128
          %945 = vsyncadd %s936, %s944
          %s946 = smul.addr %s35, 4
          %s947 = sadd.s32 %s36, %s946
          %s948 = smul.addr %s947, 128
          %s949 = scalar_lea.hbm %s8, %s948
          %s951 = sshll.u32 %s939, 4
          %s952 = int_to_ptr.vmem [resolvable:$true] %s951
          %954 = dma.vmem_to_hbm [thread:$0]  %s952, 128, %s949, %s936
        $region76: #{tpu_custom_call.1} parent=51 // pred_fallthru
          _
      $region52: #{tpu_custom_call.1} parent=5 // pred_fallthru
        _
      %p955 = scmp.le.s32.totalorder 2, %s26
      // Predicated region
      $region77: #{tpu_custom_call.1} parent=5 // pred_check
        %p956 = pneg %p955
      $region78: #{tpu_custom_call.1} parent=5 // pred_check_branch
        %958 = sbr.rel (%p956) target = $region80
      $region79: #{tpu_custom_call.1} parent=5 // pred_region
        %s959 = ssub.s32 %s26, 2
        // Predicated region
        $region81: #{tpu_custom_call.1} parent=79 // pred_check
          %p960 = pneg %p277
        $region82: #{tpu_custom_call.1} parent=79 // pred_check_branch
          %962 = sbr.rel (%p960) target = $region84
        $region83: #{tpu_custom_call.1} parent=79 // pred_region
          %s963 = sand.u32 %s262, 1
          %s964 = scalar_lea.sflag [#allocation4], %s963
          %s965 = sand.u32 %s262, 1
          %s966 = smul.addr %s965, 8
          %s967 = scalar_lea.vmem [#allocation11], %s966
          %968 = dma.done %s964, 128
        $region84: #{tpu_custom_call.1} parent=79 // pred_fallthru
          _
      $region80: #{tpu_custom_call.1} parent=5 // pred_fallthru
        _
    $region6: #{tpu_custom_call.1} parent=1 // loop_footer
      %s30 = sadd.s32 1, %s26
    $region7: #{tpu_custom_call.1} parent=1 // loop_footer_branch
      %25 = sbr.rel target = $region3
    $region8: #{tpu_custom_call.1} parent=1 // loop_exit
      _
    %969 = vsyncpa [#allocation3], 1
    %s970 = scalar_lea.sflag [#allocation3], 1
    %971 = vsyncpa %s970, 1
    %972 = vsyncpa [#allocation6], 1
    %s973 = scalar_lea.sflag [#allocation6], 1
    %974 = vsyncpa %s973, 1
    %975 = vsyncpa [#allocation9], 1
    %s976 = scalar_lea.sflag [#allocation9], 1
    %977 = vsyncpa %s976, 1
    %978 = vsyncpa [#allocation4], 1
    %s979 = scalar_lea.sflag [#allocation4], 1
    %980 = vsyncpa %s979, 1

</llo_original>
